<compile_context>
chip_gen: v5e
topology: v5e:2x2
jax: 0.10.0
libtpu: 0.0.40
codegen_flags: <defaults>
</compile_context>

<pallas_src>
import functools
import math

import jax
import jax.numpy as jnp
from jax.experimental import pallas as pl
from jax.experimental.pallas import tpu as pltpu

LN_EPS = 1e-5
NEG_BIG = -1e30


# ---------------------------------------------------------------------------
# VMEM budgets (generation-aware: 128 MiB parts get ~2x the v7x budget)
# ---------------------------------------------------------------------------
@functools.lru_cache(maxsize=None)
def _vmem_capacity_bytes():
    try:
        cap = int(getattr(pltpu.get_tpu_info(), "vmem_capacity_bytes", 0) or 0)
        if cap > 0:
            return cap
    except Exception:
        pass
    return 64 * 1024 * 1024            # conservative (v7x-sized) default


def _vmem_limit_bytes():
    return min(_vmem_capacity_bytes() * 3 // 4, 100 * 1024 * 1024)


def _tile_budget_bytes():
    return _vmem_limit_bytes() // 2    # what the tile pickers size against (incl. 2x buffering)


# ---------------------------------------------------------------------------
# Helpers
# ---------------------------------------------------------------------------
def _layer_norm(x, g, b):
    mu = jnp.mean(x, axis=-1, keepdims=True)
    var = jnp.mean((x - mu) ** 2, axis=-1, keepdims=True)
    return (x - mu) * jax.lax.rsqrt(var + LN_EPS) * g + b


def _divisors_desc(n):
    ds = set()
    i = 1
    while i * i <= n:
        if n % i == 0:
            ds.add(i)
            ds.add(n // i)
        i += 1
    return sorted(ds, reverse=True)


def _pick_row_tile(T, bytes_per_row, const_bytes=0):
    """Largest divisor of T (mult. of 8 or == T) whose 2x-buffered slab fits the budget."""
    avail = max(0, _tile_budget_bytes() - const_bytes)
    for tm in _divisors_desc(T):
        if (tm % 8 == 0 or tm == T) and 2 * tm * bytes_per_row <= avail:
            return tm
    return T


def _pick_conv_tile(L, p, d_h, d_model, K, max_tq=None):
    budget = _tile_budget_bytes()
    const = K * K * d_h * d_h * 2 + 2 * d_h * d_model * 2 + 64 * 1024
    for tq in _divisors_desc(L):
        if max_tq is not None and tq > max_tq:
            continue
        if tq < L and tq < p:                 # halo logic needs tq >= p when multi-tile
            continue
        halo = 2 * (tq + 2 * p) * (L + 2 * p) * d_h * 2         # double-buffered bf16 slab
        io = 2 * tq * L * (2 * d_model * 4 + d_h * 2 + 4)       # res + e out + h out + mask
        work = tq * L * (4 * d_h * 4 + 3 * d_model * 4)         # f32 intermediates (rough)
        if const + halo + io + work <= budget:
            return tq
    raise ValueError(
        f"conv tile picker: no row tile for L={L}, p={p}, d_h={d_h}, d_model={d_model} "
        f"fits the {budget // (1 << 20)} MiB VMEM budget; tile along the width axis too "
        f"or reduce the dilation.")


# ---------------------------------------------------------------------------
# Embedder (1x1 conv d_in -> d_model)
# ---------------------------------------------------------------------------
def _embed_kernel(x_ref, w_ref, b_ref, o_ref):
    o_ref[...] = jnp.dot(x_ref[...].astype(jnp.bfloat16), w_ref[...],
                         preferred_element_type=jnp.float32) + b_ref[...]


def embed(x2, w, b):
    T, d_in = x2.shape
    d_model = w.shape[1]
    tm = _pick_row_tile(T, (d_in + d_model) * 4 + d_in * 2,
                        const_bytes=d_in * d_model * 2 + d_model * 4)
    return pl.pallas_call(
        _embed_kernel,
        out_shape=jax.ShapeDtypeStruct((T, d_model), jnp.float32),
        grid=(T // tm,),
        in_specs=[pl.BlockSpec((tm, d_in), lambda i: (i, 0)),
                  pl.BlockSpec((d_in, d_model), lambda i: (0, 0)),
                  pl.BlockSpec((1, d_model), lambda i: (0, 0))],
        out_specs=pl.BlockSpec((tm, d_model), lambda i: (i, 0)),
        compiler_params=pltpu.CompilerParams(
            dimension_semantics=("parallel",),
            vmem_limit_bytes=_vmem_limit_bytes()),
    )(x2, w, b.reshape(1, d_model))


# ---------------------------------------------------------------------------
# Kernel A (block 0 only): LN1 + ReLU + pff1 + LN2 + ReLU + mask  -> bf16
# ---------------------------------------------------------------------------
def _pff1_ln_mask_kernel(x_ref, m_ref, g1_ref, b1_ref, w1_ref, bb1_ref,
                         g2_ref, b2_ref, o_ref):
    h = jnp.maximum(_layer_norm(x_ref[...], g1_ref[...], b1_ref[...]), 0.0)
    h1 = jnp.dot(h.astype(jnp.bfloat16), w1_ref[...],
                 preferred_element_type=jnp.float32) + bb1_ref[...]
    h2 = jnp.maximum(_layer_norm(h1, g2_ref[...], b2_ref[...]), 0.0) * m_ref[...]
    o_ref[...] = h2.astype(jnp.bfloat16)


def pff1_ln_mask(e, mflat, g1, b1, w1, bb1, g2, b2):
    T, d_model = e.shape
    d_h = w1.shape[1]
    tm = _pick_row_tile(T, d_model * 4 + 4 + d_h * 2 + (d_model + 2 * d_h) * 4,
                        const_bytes=d_model * d_h * 2 + 4 * d_model + 4 * d_h)
    vec = lambda v: v.reshape(1, -1)
    return pl.pallas_call(
        _pff1_ln_mask_kernel,
        out_shape=jax.ShapeDtypeStruct((T, d_h), jnp.bfloat16),
        grid=(T // tm,),
        in_specs=[pl.BlockSpec((tm, d_model), lambda i: (i, 0)),
                  pl.BlockSpec((tm, 1), lambda i: (i, 0)),
                  pl.BlockSpec((1, d_model), lambda i: (0, 0)),
                  pl.BlockSpec((1, d_model), lambda i: (0, 0)),
                  pl.BlockSpec((d_model, d_h), lambda i: (0, 0)),
                  pl.BlockSpec((1, d_h), lambda i: (0, 0)),
                  pl.BlockSpec((1, d_h), lambda i: (0, 0)),
                  pl.BlockSpec((1, d_h), lambda i: (0, 0))],
        out_specs=pl.BlockSpec((tm, d_h), lambda i: (i, 0)),
        compiler_params=pltpu.CompilerParams(
            dimension_semantics=("parallel",),
            vmem_limit_bytes=_vmem_limit_bytes()),
    )(e, mflat, vec(g1), vec(b1), w1, vec(bb1), vec(g2), vec(b2))


# ---------------------------------------------------------------------------
# Kernel B: dilated KxK conv + bias + LN3 + ReLU + pff2 + residual
#           (+ fused kernel A of the NEXT block when next_params is given)
# ---------------------------------------------------------------------------
def _make_conv_kernel(*, K, dil, p, tq, L, d_h, d_model, n_rt, fuse):
    taps = [(ki, kj) for ki in range(K) for kj in range(K)]

    def kernel(*refs):
        if fuse:
            (h_hbm, wc_ref, bc_ref, g3_ref, b3_ref, w2_ref, b2_ref, res_ref,
             m_ref, ng1_ref, nb1_ref, nw1_ref, nbb1_ref, ng2_ref, nb2_ref,
             oe_ref, oh_ref, hbuf, sem) = refs
        else:
            (h_hbm, wc_ref, bc_ref, g3_ref, b3_ref, w2_ref, b2_ref, res_ref,
             oe_ref, hbuf, sem) = refs

        n = pl.program_id(0)
        i = pl.program_id(1)
        slot = i & 1

        def fetch_start(ii, sl):
            # interior rows of the tile (always valid)
            pltpu.make_async_copy(
                h_hbm.at[n, pl.ds(ii * tq, tq), :, :],
                hbuf.at[sl, pl.ds(p, tq), pl.ds(p, L), :],
                sem.at[sl]).start()
            if p > 0:
                @pl.when(ii > 0)              # top halo exists iff not the first tile
                def _():
                    pltpu.make_async_copy(
                        h_hbm.at[n, pl.ds(ii * tq - p, p), :, :],
                        hbuf.at[sl, pl.ds(0, p), pl.ds(p, L), :],
                        sem.at[sl]).start()

                @pl.when(ii < n_rt - 1)       # bottom halo exists iff not the last tile
                def _():
                    pltpu.make_async_copy(
                        h_hbm.at[n, pl.ds(ii * tq + tq, p), :, :],
                        hbuf.at[sl, pl.ds(p + tq, p), pl.ds(p, L), :],
                        sem.at[sl]).start()

        def fetch_wait(ii, sl):
            # Reconstructed descriptors (same shapes) just to consume the completions;
            # all waits happen before any compute reads, so every copy has landed.
            pltpu.make_async_copy(
                h_hbm.at[n, pl.ds(0, tq), :, :],
                hbuf.at[sl, pl.ds(p, tq), pl.ds(p, L), :],
                sem.at[sl]).wait()
            if p > 0:
                @pl.when(ii > 0)
                def _():
                    pltpu.make_async_copy(
                        h_hbm.at[n, pl.ds(0, p), :, :],
                        hbuf.at[sl, pl.ds(0, p), pl.ds(p, L), :],
                        sem.at[sl]).wait()

                @pl.when(ii < n_rt - 1)
                def _():
                    pltpu.make_async_copy(
                        h_hbm.at[n, pl.ds(0, p), :, :],
                        hbuf.at[sl, pl.ds(p + tq, p), pl.ds(p, L), :],
                        sem.at[sl]).wait()

        # Prime the double buffer at the first row tile of each sample, then keep one
        # tile in flight: prefetch tile i+1 into the other slot before waiting on i.
        @pl.when(i == 0)
        def _():
            fetch_start(i, slot)

        @pl.when(i + 1 < n_rt)
        def _():
            fetch_start(i + 1, 1 - slot)

        fetch_wait(i, slot)

        cur = hbuf.at[slot]
        if p > 0:
            # Zero halo regions the DMA never writes (left/right always; top/bottom only
            # at the image boundary).  VMEM-only stores; replaces the jnp.pad round trip.
            zcol = jnp.zeros((tq + 2 * p, p, d_h), jnp.bfloat16)
            zrow = jnp.zeros((p, L + 2 * p, d_h), jnp.bfloat16)
            cur[:, 0:p, :] = zcol
            cur[:, p + L:p + L + p, :] = zcol

            @pl.when(i == 0)
            def _():
                cur[0:p, :, :] = zrow

            @pl.when(i == n_rt - 1)
            def _():
                cur[p + tq:p + tq + p, :, :] = zrow

        # Dilated KxK conv: K^2 shifted (tq*L, d_h)x(d_h, d_h) matmuls, f32 accumulate.
        acc = jnp.zeros((tq * L, d_h), jnp.float32)
        for t, (ki, kj) in enumerate(taps):
            a = cur[ki * dil:ki * dil + tq, kj * dil:kj * dil + L, :]
            acc = acc + jnp.dot(a.reshape(tq * L, d_h), wc_ref[t],
                                preferred_element_type=jnp.float32)
        acc = acc + bc_ref[...]

        h3 = jnp.maximum(_layer_norm(acc, g3_ref[...], b3_ref[...]), 0.0)
        e_new = (res_ref[...].reshape(tq * L, d_model)
                 + jnp.dot(h3.astype(jnp.bfloat16), w2_ref[...],
                           preferred_element_type=jnp.float32)
                 + b2_ref[...])
        oe_ref[...] = e_new.reshape(1, tq, L, d_model)

        if fuse:
            # Next block's kernel A fused into this epilogue (e_new already in VMEM).
            hh = jnp.maximum(_layer_norm(e_new, ng1_ref[...], nb1_ref[...]), 0.0)
            h1 = jnp.dot(hh.astype(jnp.bfloat16), nw1_ref[...],
                         preferred_element_type=jnp.float32) + nbb1_ref[...]
            h2 = (jnp.maximum(_layer_norm(h1, ng2_ref[...], nb2_ref[...]), 0.0)
                  * m_ref[...].reshape(tq * L, 1))
            oh_ref[...] = h2.astype(jnp.bfloat16).reshape(1, tq, L, d_h)

    return kernel


def conv_block(h, wconv, bconv, g3, b3, w2, b2, res, *, K, dil,
               mask4=None, next_params=None, max_tq=None):
    """h: (N, L, L, d_h) bf16 (unpadded, HBM); res: (N, L, L, d_model) f32.

    Returns (e_new, h_next) with h_next None when next_params is None.
    """
    N, L, _, d_h = h.shape
    d_model = w2.shape[1]
    p = dil * (K - 1) // 2
    tq = _pick_conv_tile(L, p, d_h, d_model, K, max_tq=max_tq)
    n_rt = L // tq
    fuse = next_params is not None

    kernel = _make_conv_kernel(K=K, dil=dil, p=p, tq=tq, L=L, d_h=d_h,
                               d_model=d_model, n_rt=n_rt, fuse=fuse)
    vec = lambda v: v.reshape(1, -1)

    in_specs = [
        pl.BlockSpec(memory_space=pl.ANY),                              # h (HBM, manual DMA)
        pl.BlockSpec((K * K, d_h, d_h), lambda n, i: (0, 0, 0)),        # conv weights (bf16)
        pl.BlockSpec((1, d_h), lambda n, i: (0, 0)),                    # conv bias
        pl.BlockSpec((1, d_h), lambda n, i: (0, 0)),                    # ln3 gamma
        pl.BlockSpec((1, d_h), lambda n, i: (0, 0)),                    # ln3 beta
        pl.BlockSpec((d_h, d_model), lambda n, i: (0, 0)),              # pff2 W (bf16)
        pl.BlockSpec((1, d_model), lambda n, i: (0, 0)),                # pff2 b
        pl.BlockSpec((1, tq, L, d_model), lambda n, i: (n, i, 0, 0)),   # residual e
    ]
    inputs = [h, wconv, vec(bconv), vec(g3), vec(b3), w2, vec(b2), res]

    out_shapes = [jax.ShapeDtypeStruct((N, L, L, d_model), jnp.float32)]
    out_specs = [pl.BlockSpec((1, tq, L, d_model), lambda n, i: (n, i, 0, 0))]

    if fuse:
        ng1, nb1, nw1, nbb1, ng2, nb2 = next_params
        in_specs += [
            pl.BlockSpec((1, tq, L, 1), lambda n, i: (n, i, 0, 0)),     # mask
            pl.BlockSpec((1, d_model), lambda n, i: (0, 0)),            # next ln1 gamma
            pl.BlockSpec((1, d_model), lambda n, i: (0, 0)),            # next ln1 beta
            pl.BlockSpec((d_model, d_h), lambda n, i: (0, 0)),          # next pff1 W
            pl.BlockSpec((1, d_h), lambda n, i: (0, 0)),                # next pff1 b
            pl.BlockSpec((1, d_h), lambda n, i: (0, 0)),                # next ln2 gamma
            pl.BlockSpec((1, d_h), lambda n, i: (0, 0)),                # next ln2 beta
        ]
        inputs += [mask4, vec(ng1), vec(nb1), nw1, vec(nbb1), vec(ng2), vec(nb2)]
        out_shapes.append(jax.ShapeDtypeStruct((N, L, L, d_h), jnp.bfloat16))
        out_specs.append(pl.BlockSpec((1, tq, L, d_h), lambda n, i: (n, i, 0, 0)))

    out_shape = tuple(out_shapes) if fuse else out_shapes[0]
    out_specs_arg = tuple(out_specs) if fuse else out_specs[0]

    outs = pl.pallas_call(
        kernel,
        out_shape=out_shape,
        grid=(N, n_rt),
        in_specs=in_specs,
        out_specs=out_specs_arg,
        scratch_shapes=[pltpu.VMEM((2, tq + 2 * p, L + 2 * p, d_h), jnp.bfloat16),
                        pltpu.SemaphoreType.DMA((2,))],
        compiler_params=pltpu.CompilerParams(
            dimension_semantics=("parallel", "arbitrary"),
            vmem_limit_bytes=_vmem_limit_bytes()),
    )(*inputs)

    if fuse:
        return outs[0], outs[1]
    return outs, None


# ---------------------------------------------------------------------------
# Attention2d: masked softmax pooling over P = L*L (online softmax reduction)
# ---------------------------------------------------------------------------
def _attn_kernel(x_ref, m_ref, w_ref, b_ref, o_ref, m_sc, l_sc, acc_sc):
    j = pl.program_id(1)

    @pl.when(j == 0)
    def _():
        m_sc[...] = jnp.full_like(m_sc, NEG_BIG)
        l_sc[...] = jnp.zeros_like(l_sc)
        acc_sc[...] = jnp.zeros_like(acc_sc)

    x = x_ref[0]                                               # (tp, d) f32
    msk = m_ref[0]                                             # (tp, 1) f32
    # 1-wide logits: VPU multiply + lane reduce (avoids a 1-column MXU matvec).
    logits = jnp.sum(x * w_ref[...], axis=-1, keepdims=True) + b_ref[...]
    logits = jnp.where(msk > 0.5, logits, NEG_BIG)
    m_new = jnp.maximum(m_sc[...], jnp.max(logits, axis=0, keepdims=True))   # (1, 1)
    alpha = jnp.exp(m_sc[...] - m_new)
    pnum = jnp.exp(logits - m_new) * msk                       # (tp, 1)
    l_sc[...] = alpha * l_sc[...] + jnp.sum(pnum, axis=0, keepdims=True)
    # Weighted feature sum as a (1, tp) @ (tp, d) matmul on the MXU.
    acc_sc[...] = alpha * acc_sc[...] + jnp.dot(pnum.T, x,
                                                preferred_element_type=jnp.float32)
    m_sc[...] = m_new

    @pl.when(j == pl.num_programs(1) - 1)
    def _():
        o_ref[0] = acc_sc[...] * pl.reciprocal(l_sc[...])      # exact reciprocal


def attention2d(feat, mask, w, b):
    # feat: (N, P, d) f32, mask: (N, P, 1), w: (d,) f32, b: (1, 1) -> (N, d)
    N, P, d = feat.shape
    w_row = w.astype(jnp.float32).reshape(1, d)
    tp = _pick_row_tile(P, (d + 1) * 4 + d * 4, const_bytes=d * 8 + 4)
    out = pl.pallas_call(
        _attn_kernel,
        out_shape=jax.ShapeDtypeStruct((N, 1, d), jnp.float32),
        grid=(N, P // tp),
        in_specs=[pl.BlockSpec((1, tp, d), lambda i, j: (i, j, 0)),
                  pl.BlockSpec((1, tp, 1), lambda i, j: (i, j, 0)),
                  pl.BlockSpec((1, d), lambda i, j: (0, 0)),
                  pl.BlockSpec((1, 1), lambda i, j: (0, 0))],
        out_specs=pl.BlockSpec((1, 1, d), lambda i, j: (i, 0, 0)),
        scratch_shapes=[pltpu.VMEM((1, 1), jnp.float32),
                        pltpu.VMEM((1, 1), jnp.float32),
                        pltpu.VMEM((1, d), jnp.float32)],
        compiler_params=pltpu.CompilerParams(
            dimension_semantics=("parallel", "arbitrary"),
            vmem_limit_bytes=_vmem_limit_bytes()),
    )(feat, mask, w_row, b)
    return out.reshape(N, d)


# ---------------------------------------------------------------------------
# Params + forward
# ---------------------------------------------------------------------------
def init_params(key, d_in, d_model, n_layers, kernel_size, r):
    d_h = d_model // 2
    log2 = int(math.log2(r)) + 1
    dilations = [2 ** (n % log2) for n in range(n_layers)]
    keys = iter(jax.random.split(key, 4 + 12 * max(n_layers, 1)))
    nk = lambda: next(keys)
    K = kernel_size

    def dense(cin, cout):
        w = jax.random.normal(nk(), (cin, cout), jnp.float32) / math.sqrt(cin)
        b = 0.1 * jax.random.normal(nk(), (cout,), jnp.float32)
        return w.astype(jnp.bfloat16), b          # MXU weights stored in bf16

    def ln(c):
        return (1.0 + 0.1 * jax.random.normal(nk(), (c,), jnp.float32),
                0.1 * jax.random.normal(nk(), (c,), jnp.float32))

    emb_w, emb_b = dense(d_in, d_model)
    blocks = []
    for dil in dilations:
        ln1_g, ln1_b = ln(d_model)
        pff1_w, pff1_b = dense(d_model, d_h)
        ln2_g, ln2_b = ln(d_h)
        conv_w = (jax.random.normal(nk(), (K, K, d_h, d_h), jnp.float32)
                  / math.sqrt(K * K * d_h)).astype(jnp.bfloat16)
        conv_b = 0.1 * jax.random.normal(nk(), (d_h,), jnp.float32)
        ln3_g, ln3_b = ln(d_h)
        pff2_w, pff2_b = dense(d_h, d_model)
        blocks.append(dict(dilation=dil,
                           ln1_g=ln1_g, ln1_b=ln1_b, pff1_w=pff1_w, pff1_b=pff1_b,
                           ln2_g=ln2_g, ln2_b=ln2_b,
                           conv_w=conv_w.reshape(K * K, d_h, d_h),    # tap order (ki, kj)
                           conv_b=conv_b,
                           ln3_g=ln3_g, ln3_b=ln3_b, pff2_w=pff2_w, pff2_b=pff2_b))
    attn_w = jax.random.normal(nk(), (d_model,), jnp.float32) / math.sqrt(d_model)
    attn_b = 0.1 * jax.random.normal(nk(), (1, 1), jnp.float32)
    return dict(emb_w=emb_w, emb_b=emb_b, blocks=blocks, attn_w=attn_w, attn_b=attn_b)


def structure_conditioner_forward(params, x, input_mask, kernel_size, *, max_conv_tile=None):
    # x: (N, L, L, d_in), input_mask: (N, L, L, 1) or None  ->  (N, d_model)
    N, L, _, d_in = x.shape
    if input_mask is None:
        input_mask = jnp.ones((N, L, L, 1), jnp.float32)
    input_mask = input_mask.reshape(N, L, L, 1).astype(jnp.float32)
    d_model = params['emb_w'].shape[1]
    T = N * L * L
    K = kernel_size
    mflat = input_mask.reshape(T, 1)

    # ByteNet2d embedder: 1x1 conv (no mask)
    e = embed(x.reshape(T, d_in), params['emb_w'], params['emb_b'])       # (T, d_model) f32

    blocks = params['blocks']
    if blocks:
        b0 = blocks[0]
        h = pff1_ln_mask(e, mflat, b0['ln1_g'], b0['ln1_b'], b0['pff1_w'], b0['pff1_b'],
                         b0['ln2_g'], b0['ln2_b'])                        # (T, d_h) bf16
        e4 = e.reshape(N, L, L, d_model)
        h4 = h.reshape(N, L, L, -1)
        for bi, blk in enumerate(blocks):
            nxt = blocks[bi + 1] if bi + 1 < len(blocks) else None
            next_params = None
            if nxt is not None:
                next_params = (nxt['ln1_g'], nxt['ln1_b'], nxt['pff1_w'], nxt['pff1_b'],
                               nxt['ln2_g'], nxt['ln2_b'])
            e4, h4 = conv_block(h4, blk['conv_w'], blk['conv_b'],
                                blk['ln3_g'], blk['ln3_b'],
                                blk['pff2_w'], blk['pff2_b'], e4,
                                K=K, dil=blk['dilation'], mask4=input_mask,
                                next_params=next_params, max_tq=max_conv_tile)
        e = e4.reshape(T, d_model)

    # Attention2d: 1x1 conv logits -> masked softmax over L*L -> weighted feature sum
    feat = e.reshape(N, L * L, d_model)
    m = input_mask.reshape(N, L * L, 1)
    return attention2d(feat, m, params['attn_w'], params['attn_b'])       # (N, d_model)


# ---------------------------------------------------------------------------
# Pure-JAX reference with the same numerics policy (bf16 MXU operands, f32 elsewhere)
# ---------------------------------------------------------------------------
def reference_forward(params, x, input_mask, kernel_size):
    N, L, _, d_in = x.shape
    T = N * L * L
    K = kernel_size
    mflat = input_mask.reshape(T, 1).astype(jnp.float32)

    def bf16_dot(a, w):
        return jnp.dot(a.astype(jnp.bfloat16), w.astype(jnp.bfloat16),
                       preferred_element_type=jnp.float32)

    e = bf16_dot(x.reshape(T, d_in), params['emb_w']) + params['emb_b'].reshape(1, -1)
    for blk in params['blocks']:
        h = jnp.maximum(_layer_norm(e, blk['ln1_g'], blk['ln1_b']), 0.0)
        h = bf16_dot(h, blk['pff1_w']) + blk['pff1_b'].reshape(1, -1)
        h = jnp.maximum(_layer_norm(h, blk['ln2_g'], blk['ln2_b']), 0.0) * mflat
        h = h.astype(jnp.bfloat16)
        d_h = h.shape[1]
        dil = blk['dilation']
        p = dil * (K - 1) // 2
        hp = jnp.pad(h.reshape(N, L, L, d_h), ((0, 0), (p, p), (p, p), (0, 0)))
        acc = jnp.zeros((T, d_h), jnp.float32)
        for ki in range(K):
            for kj in range(K):
                a = hp[:, ki * dil:ki * dil + L, kj * dil:kj * dil + L, :].reshape(T, d_h)
                acc = acc + jnp.dot(a, blk['conv_w'][ki * K + kj],
                                    preferred_element_type=jnp.float32)
        acc = acc + blk['conv_b'].reshape(1, -1)
        h3 = jnp.maximum(_layer_norm(acc, blk['ln3_g'], blk['ln3_b']), 0.0)
        e = e + bf16_dot(h3, blk['pff2_w']) + blk['pff2_b'].reshape(1, -1)

    d_model = e.shape[1]
    feat = e.reshape(N, L * L, d_model)
    m = input_mask.reshape(N, L * L, 1)
    logits = jnp.sum(feat * params['attn_w'].reshape(1, 1, -1), axis=-1,
                     keepdims=True) + params['attn_b'][0, 0]
    logits = jnp.where(m > 0.5, logits, -jnp.inf)
    attn = jax.nn.softmax(logits, axis=1)
    return jnp.sum(attn * feat, axis=1)


if __name__ == "__main__":
    d_in, d_model, n_layers, kernel_size, r = 4, 32, 2, 3, 2
    N, L = 2, 16

    key = jax.random.PRNGKey(0)
    kp, kx, km = jax.random.split(key, 3)
    params = init_params(kp, d_in, d_model, n_layers, kernel_size, r)
    x = 0.5 * jax.random.normal(kx, (N, L, L, d_in), jnp.float32)
    input_mask = (jax.random.uniform(km, (N, L, L, 1)) > 0.3).astype(jnp.float32)
    input_mask = input_mask.at[:, 0, 0, 0].set(1.0)   # guarantee >=1 valid position/sample

    ref = reference_forward(params, x, input_mask, kernel_size)

    # Default tiling (single row tile per sample at this L).
    out = structure_conditioner_forward(params, x, input_mask, kernel_size)
    out = jax.block_until_ready(out)
    assert out.shape == (N, d_model), out.shape
    assert bool(jnp.all(jnp.isfinite(out)))
    err = float(jnp.max(jnp.abs(out - ref)))
    if err > 1e-2:
        raise AssertionError(f"Pallas output mismatch vs JAX reference (max abs err = {err})")

    # Forced multi-tile path: exercises halo double-buffering + boundary zero-fill.
    out2 = structure_conditioner_forward(params, x, input_mask, kernel_size, max_conv_tile=8)
    out2 = jax.block_until_ready(out2)
    err2 = float(jnp.max(jnp.abs(out2 - ref)))
    if err2 > 1e-2:
        raise AssertionError(f"Pallas (tiled) mismatch vs JAX reference (max abs err = {err2})")

    print("KERNEL_OK")
</pallas_src>

<mosaic_0001>
module attributes {stable_mosaic.version = 11 : i64} {
  func.func @_embed_kernel(%arg0: i32, %arg1: memref<512x4xf32, #tpu.memory_space<vmem>>, %arg2: memref<4x32xbf16, #tpu.memory_space<vmem>>, %arg3: memref<1x32xf32, #tpu.memory_space<vmem>>, %arg4: memref<512x32xf32, #tpu.memory_space<vmem>>) attributes {dimension_semantics = [#tpu.dimension_semantics<parallel>], iteration_bounds = array<i64: 1>, scalar_prefetch = 0 : i64, scratch_operands = 0 : i64, tpu.core_type = #tpu.core_type<tc>, window_params = [{transform_indices = @transform_0, window_bounds = array<i64: 512, 4>}, {pipeline_mode = #tpu.pipeline_mode<synchronous>, transform_indices = @transform_1, window_bounds = array<i64: 4, 32>}, {pipeline_mode = #tpu.pipeline_mode<synchronous>, transform_indices = @transform_2, window_bounds = array<i64: 1, 32>}, {transform_indices = @transform_3, window_bounds = array<i64: 512, 32>}]} {
    %c0 = arith.constant 0 : index
    %c0_0 = arith.constant 0 : index
    %0 = vector.load %arg1[%c0, %c0_0] : memref<512x4xf32, #tpu.memory_space<vmem>>, vector<512x4xf32>
    %1 = arith.truncf %0 : vector<512x4xf32> to vector<512x4xbf16>
    %c0_1 = arith.constant 0 : index
    %c0_2 = arith.constant 0 : index
    %2 = vector.load %arg2[%c0_1, %c0_2] : memref<4x32xbf16, #tpu.memory_space<vmem>>, vector<4x32xbf16>
    %cst = arith.constant dense<0.000000e+00> : vector<512x32xf32>
    %3 = tpu.matmul %1, %2, %cst {dimension_numbers = #tpu.dot_dimension_numbers<[1], [0], [0], [1], [0, 0, 1, 1], [], []>} : vector<512x4xbf16>, vector<4x32xbf16>, vector<512x32xf32> -> vector<512x32xf32>
    %c0_3 = arith.constant 0 : index
    %c0_4 = arith.constant 0 : index
    %4 = vector.load %arg3[%c0_3, %c0_4] : memref<1x32xf32, #tpu.memory_space<vmem>>, vector<1x32xf32>
    %5 = vector.broadcast %4 : vector<1x32xf32> to vector<512x32xf32>
    %6 = arith.addf %3, %5 : vector<512x32xf32>
    %c0_5 = arith.constant 0 : index
    %c0_6 = arith.constant 0 : index
    %7 = vector.load %arg4[%c0_5, %c0_6] : memref<512x32xf32, #tpu.memory_space<vmem>>, vector<512x32xf32>
    tpu.vector_store %arg4[%c0_5, %c0_6], %6 {strides = array<i32>} : memref<512x32xf32, #tpu.memory_space<vmem>>, vector<512x32xf32>,
    return
  }
  func.func @transform_0(%arg0: i32) -> (i32, i32) {
    %c0_i32 = arith.constant 0 : i32
    %c0_i32_0 = arith.constant 0 : i32
    return %arg0, %c0_i32 : i32, i32
  }
  func.func @transform_1(%arg0: i32) -> (i32, i32) {
    %c0_i32 = arith.constant 0 : i32
    %c0_i32_0 = arith.constant 0 : i32
    %c0_i32_1 = arith.constant 0 : i32
    return %c0_i32, %c0_i32_0 : i32, i32
  }
  func.func @transform_2(%arg0: i32) -> (i32, i32) {
    %c0_i32 = arith.constant 0 : i32
    %c0_i32_0 = arith.constant 0 : i32
    %c0_i32_1 = arith.constant 0 : i32
    return %c0_i32, %c0_i32_0 : i32, i32
  }
  func.func @transform_3(%arg0: i32) -> (i32, i32) {
    %c0_i32 = arith.constant 0 : i32
    %c0_i32_0 = arith.constant 0 : i32
    return %arg0, %c0_i32 : i32, i32
  }
}

</mosaic_0001>

<llo_original>
// kernel: tpu_custom_call.1
$region0: #{tpu_custom_call.1}
  #allocation0 [shape = 'u32[]', space=smem, size = 0x4, offset = 0x4, fixed_abs, tag = 'smem constant byte address 0x4 - core index']
  #allocation1 [shape = 'u32[72,128]{1,0:T(1,128)}', space=vmem, size = 0x9000, scoped, tag = 'internal scratch']
  %s0 = inlined_call_operand.vmem [shape: f32[512,4], index: 0, kind: input, shape index: {}]
  %s1 = inlined_call_operand.vmem [shape: bf16[4,32], index: 1, kind: input, shape index: {}]
  %s2 = inlined_call_operand.vmem [shape: f32[1,32], index: 2, kind: input, shape index: {}]
  %s3 = inlined_call_operand.vmem [shape: f32[512,32], index: 3, kind: output, shape index: {}]
  %s4 = sld [smem:[#allocation0]]
  $region22: #{tpu_custom_call.1} parent=0
    _
  %s6 = ssub.s32 1, %s4
  %s7 = scalar_select 0, %s6, %s4
  // Predicated region
  $region2: #{tpu_custom_call.1} parent=0 // pred_check
    _
  $region3: #{tpu_custom_call.1} parent=0 // pred_check_branch
    %9 = sbr.rel (0) target = $region5
  $region4: #{tpu_custom_call.1} parent=0 // pred_region
    _
  $region5: #{tpu_custom_call.1} parent=0 // pred_fallthru
    _
  // Predicated region
  $region6: #{tpu_custom_call.1} parent=0 // pred_check
    _
  $region7: #{tpu_custom_call.1} parent=0 // pred_check_branch
    %11 = sbr.rel (0) target = $region9
  $region8: #{tpu_custom_call.1} parent=0 // pred_region
    _
  $region9: #{tpu_custom_call.1} parent=0 // pred_fallthru
    _
  // Predicated region
  $region10: #{tpu_custom_call.1} parent=0 // pred_check
    _
  $region11: #{tpu_custom_call.1} parent=0 // pred_check_branch
    %13 = sbr.rel (0) target = $region13
  $region12: #{tpu_custom_call.1} parent=0 // pred_region
    _
  $region13: #{tpu_custom_call.1} parent=0 // pred_fallthru
    _
  %v15 = vld [vmem:[%s0] sm:$0xff]
  %v16 = vld [vmem:[%s0 + $0x8] sm:$0xff]
  %v17 = vld [vmem:[%s0 + $0x10] sm:$0xff]
  %v18 = vld [vmem:[%s0 + $0x18] sm:$0xff]
  %v19 = vld [vmem:[%s0 + $0x20] sm:$0xff]
  %v20 = vld [vmem:[%s0 + $0x28] sm:$0xff]
  %v21 = vld [vmem:[%s0 + $0x30] sm:$0xff]
  %v22 = vld [vmem:[%s0 + $0x38] sm:$0xff]
  %v23 = vld [vmem:[%s0 + $0x40] sm:$0xff]
  %v24 = vld [vmem:[%s0 + $0x48] sm:$0xff]
  %v25 = vld [vmem:[%s0 + $0x50] sm:$0xff]
  %v26 = vld [vmem:[%s0 + $0x58] sm:$0xff]
  %v27 = vld [vmem:[%s0 + $0x60] sm:$0xff]
  %v28 = vld [vmem:[%s0 + $0x68] sm:$0xff]
  %v29 = vld [vmem:[%s0 + $0x70] sm:$0xff]
  %v30 = vld [vmem:[%s0 + $0x78] sm:$0xff]
  %v31 = vld [vmem:[%s0 + $0x80] sm:$0xff]
  %v32 = vld [vmem:[%s0 + $0x88] sm:$0xff]
  %v33 = vld [vmem:[%s0 + $0x90] sm:$0xff]
  %v34 = vld [vmem:[%s0 + $0x98] sm:$0xff]
  %v35 = vld [vmem:[%s0 + $0xa0] sm:$0xff]
  %v36 = vld [vmem:[%s0 + $0xa8] sm:$0xff]
  %v37 = vld [vmem:[%s0 + $0xb0] sm:$0xff]
  %v38 = vld [vmem:[%s0 + $0xb8] sm:$0xff]
  %v39 = vld [vmem:[%s0 + $0xc0] sm:$0xff]
  %v40 = vld [vmem:[%s0 + $0xc8] sm:$0xff]
  %v41 = vld [vmem:[%s0 + $0xd0] sm:$0xff]
  %v42 = vld [vmem:[%s0 + $0xd8] sm:$0xff]
  %v43 = vld [vmem:[%s0 + $0xe0] sm:$0xff]
  %v44 = vld [vmem:[%s0 + $0xe8] sm:$0xff]
  %v45 = vld [vmem:[%s0 + $0xf0] sm:$0xff]
  %v46 = vld [vmem:[%s0 + $0xf8] sm:$0xff]
  %v47 = vld [vmem:[%s0 + $0x100] sm:$0xff]
  %v48 = vld [vmem:[%s0 + $0x108] sm:$0xff]
  %v49 = vld [vmem:[%s0 + $0x110] sm:$0xff]
  %v50 = vld [vmem:[%s0 + $0x118] sm:$0xff]
  %v51 = vld [vmem:[%s0 + $0x120] sm:$0xff]
  %v52 = vld [vmem:[%s0 + $0x128] sm:$0xff]
  %v53 = vld [vmem:[%s0 + $0x130] sm:$0xff]
  %v54 = vld [vmem:[%s0 + $0x138] sm:$0xff]
  %v55 = vld [vmem:[%s0 + $0x140] sm:$0xff]
  %v56 = vld [vmem:[%s0 + $0x148] sm:$0xff]
  %v57 = vld [vmem:[%s0 + $0x150] sm:$0xff]
  %v58 = vld [vmem:[%s0 + $0x158] sm:$0xff]
  %v59 = vld [vmem:[%s0 + $0x160] sm:$0xff]
  %v60 = vld [vmem:[%s0 + $0x168] sm:$0xff]
  %v61 = vld [vmem:[%s0 + $0x170] sm:$0xff]
  %v62 = vld [vmem:[%s0 + $0x178] sm:$0xff]
  %v63 = vld [vmem:[%s0 + $0x180] sm:$0xff]
  %v64 = vld [vmem:[%s0 + $0x188] sm:$0xff]
  %v65 = vld [vmem:[%s0 + $0x190] sm:$0xff]
  %v66 = vld [vmem:[%s0 + $0x198] sm:$0xff]
  %v67 = vld [vmem:[%s0 + $0x1a0] sm:$0xff]
  %v68 = vld [vmem:[%s0 + $0x1a8] sm:$0xff]
  %v69 = vld [vmem:[%s0 + $0x1b0] sm:$0xff]
  %v70 = vld [vmem:[%s0 + $0x1b8] sm:$0xff]
  %v71 = vld [vmem:[%s0 + $0x1c0] sm:$0xff]
  %v72 = vld [vmem:[%s0 + $0x1c8] sm:$0xff]
  %v73 = vld [vmem:[%s0 + $0x1d0] sm:$0xff]
  %v74 = vld [vmem:[%s0 + $0x1d8] sm:$0xff]
  %v75 = vld [vmem:[%s0 + $0x1e0] sm:$0xff]
  %v76 = vld [vmem:[%s0 + $0x1e8] sm:$0xff]
  %v77 = vld [vmem:[%s0 + $0x1f0] sm:$0xff]
  %v78 = vld [vmem:[%s0 + $0x1f8] sm:$0xff]
  %v79 = vpack.c.bf16 %v16, %v15
  %v80 = vpack.c.bf16 %v18, %v17
  %v81 = vpack.c.bf16 %v20, %v19
  %v82 = vpack.c.bf16 %v22, %v21
  %v83 = vpack.c.bf16 %v24, %v23
  %v84 = vpack.c.bf16 %v26, %v25
  %v85 = vpack.c.bf16 %v28, %v27
  %v86 = vpack.c.bf16 %v30, %v29
  %v87 = vpack.c.bf16 %v32, %v31
  %v88 = vpack.c.bf16 %v34, %v33
  %v89 = vpack.c.bf16 %v36, %v35
  %v90 = vpack.c.bf16 %v38, %v37
  %v91 = vpack.c.bf16 %v40, %v39
  %v92 = vpack.c.bf16 %v42, %v41
  %v93 = vpack.c.bf16 %v44, %v43
  %v94 = vpack.c.bf16 %v46, %v45
  %v95 = vpack.c.bf16 %v48, %v47
  %v96 = vpack.c.bf16 %v50, %v49
  %v97 = vpack.c.bf16 %v52, %v51
  %v98 = vpack.c.bf16 %v54, %v53
  %v99 = vpack.c.bf16 %v56, %v55
  %v100 = vpack.c.bf16 %v58, %v57
  %v101 = vpack.c.bf16 %v60, %v59
  %v102 = vpack.c.bf16 %v62, %v61
  %v103 = vpack.c.bf16 %v64, %v63
  %v104 = vpack.c.bf16 %v66, %v65
  %v105 = vpack.c.bf16 %v68, %v67
  %v106 = vpack.c.bf16 %v70, %v69
  %v107 = vpack.c.bf16 %v72, %v71
  %v108 = vpack.c.bf16 %v74, %v73
  %v109 = vpack.c.bf16 %v76, %v75
  %v110 = vpack.c.bf16 %v78, %v77
  %v111 = vld [vmem:[%s1] sm:$0x3]
  %v112 = vld [vmem:[%s2] sm:$0x1]
  %v114 = vperm.slane %v112, 0
  %vm116 = vcmask 31744
  %v118 = vsel %vm116, %v79, 0
  %v121 = vsel %vm116, %v80, 0
  %v124 = vsel %vm116, %v81, 0
  %v127 = vsel %vm116, %v82, 0
  %v130 = vsel %vm116, %v83, 0
  %v133 = vsel %vm116, %v84, 0
  %v136 = vsel %vm116, %v85, 0
  %v139 = vsel %vm116, %v86, 0
  %v142 = vsel %vm116, %v87, 0
  %v145 = vsel %vm116, %v88, 0
  %v148 = vsel %vm116, %v89, 0
  %v151 = vsel %vm116, %v90, 0
  %v154 = vsel %vm116, %v91, 0
  %v157 = vsel %vm116, %v92, 0
  %v160 = vsel %vm116, %v93, 0
  %v163 = vsel %vm116, %v94, 0
  %v166 = vsel %vm116, %v95, 0
  %v169 = vsel %vm116, %v96, 0
  %v172 = vsel %vm116, %v97, 0
  %v175 = vsel %vm116, %v98, 0
  %v178 = vsel %vm116, %v99, 0
  %v181 = vsel %vm116, %v100, 0
  %v184 = vsel %vm116, %v101, 0
  %v187 = vsel %vm116, %v102, 0
  %v190 = vsel %vm116, %v103, 0
  %v193 = vsel %vm116, %v104, 0
  %v196 = vsel %vm116, %v105, 0
  %v199 = vsel %vm116, %v106, 0
  %v202 = vsel %vm116, %v107, 0
  %v205 = vsel %vm116, %v108, 0
  %v208 = vsel %vm116, %v109, 0
  %v211 = vsel %vm116, %v110, 0
  %vm213 = vcmask 1041408
  %v215 = vsel %vm213, %v111, 0
  %217 = vmatpush.bf16.msra.mxu0 0
  %218 = vmatpush.bf16.msra.mxu0 0
  %219 = vmatpush.bf16.msra.mxu0 0
  %220 = vmatpush.bf16.msra.mxu0 0
  %221 = vmatpush.bf16.msra.mxu0 0
  %222 = vmatpush.bf16.msra.mxu0 0
  %223 = vmatpush.bf16.msra.mxu0 0
  %224 = vmatpush.bf16.msra.mxu0 %v215
  %225 = vmatmul.bf16.gmra.mxu0 %v118
  %v226 = vpop.f32.mrf.mxu0
  %v227 = vadd.f32 %v114, %v226
  %v228 = vpop.f32.mrf.mxu0
  %v229 = vadd.f32 %v114, %v228
  %230 = vmatmul.bf16.gmra.mxu0 %v121
  %v231 = vpop.f32.mrf.mxu0
  %v232 = vadd.f32 %v114, %v231
  %v233 = vpop.f32.mrf.mxu0
  %v234 = vadd.f32 %v114, %v233
  %235 = vmatmul.bf16.gmra.mxu0 %v124
  %v236 = vpop.f32.mrf.mxu0
  %v237 = vadd.f32 %v114, %v236
  %v238 = vpop.f32.mrf.mxu0
  %v239 = vadd.f32 %v114, %v238
  %240 = vmatmul.bf16.gmra.mxu0 %v127
  %v241 = vpop.f32.mrf.mxu0
  %v242 = vadd.f32 %v114, %v241
  %v243 = vpop.f32.mrf.mxu0
  %v244 = vadd.f32 %v114, %v243
  %245 = vmatmul.bf16.gmra.mxu0 %v130
  %v246 = vpop.f32.mrf.mxu0
  %v247 = vadd.f32 %v114, %v246
  %v248 = vpop.f32.mrf.mxu0
  %v249 = vadd.f32 %v114, %v248
  %250 = vmatmul.bf16.gmra.mxu0 %v133
  %v251 = vpop.f32.mrf.mxu0
  %v252 = vadd.f32 %v114, %v251
  %v253 = vpop.f32.mrf.mxu0
  %v254 = vadd.f32 %v114, %v253
  %255 = vmatmul.bf16.gmra.mxu0 %v136
  %v256 = vpop.f32.mrf.mxu0
  %v257 = vadd.f32 %v114, %v256
  %v258 = vpop.f32.mrf.mxu0
  %v259 = vadd.f32 %v114, %v258
  %260 = vmatmul.bf16.gmra.mxu0 %v139
  %v261 = vpop.f32.mrf.mxu0
  %v262 = vadd.f32 %v114, %v261
  %v263 = vpop.f32.mrf.mxu0
  %v264 = vadd.f32 %v114, %v263
  %265 = vmatmul.bf16.gmra.mxu0 %v142
  %v266 = vpop.f32.mrf.mxu0
  %v267 = vadd.f32 %v114, %v266
  %v268 = vpop.f32.mrf.mxu0
  %v269 = vadd.f32 %v114, %v268
  %270 = vmatmul.bf16.gmra.mxu0 %v145
  %v271 = vpop.f32.mrf.mxu0
  %v272 = vadd.f32 %v114, %v271
  %v273 = vpop.f32.mrf.mxu0
  %v274 = vadd.f32 %v114, %v273
  %275 = vmatmul.bf16.gmra.mxu0 %v148
  %v276 = vpop.f32.mrf.mxu0
  %v277 = vadd.f32 %v114, %v276
  %v278 = vpop.f32.mrf.mxu0
  %v279 = vadd.f32 %v114, %v278
  %280 = vmatmul.bf16.gmra.mxu0 %v151
  %v281 = vpop.f32.mrf.mxu0
  %v282 = vadd.f32 %v114, %v281
  %v283 = vpop.f32.mrf.mxu0
  %v284 = vadd.f32 %v114, %v283
  %285 = vmatmul.bf16.gmra.mxu0 %v154
  %v286 = vpop.f32.mrf.mxu0
  %v287 = vadd.f32 %v114, %v286
  %v288 = vpop.f32.mrf.mxu0
  %v289 = vadd.f32 %v114, %v288
  %290 = vmatmul.bf16.gmra.mxu0 %v157
  %v291 = vpop.f32.mrf.mxu0
  %v292 = vadd.f32 %v114, %v291
  %v293 = vpop.f32.mrf.mxu0
  %v294 = vadd.f32 %v114, %v293
  %295 = vmatmul.bf16.gmra.mxu0 %v160
  %v296 = vpop.f32.mrf.mxu0
  %v297 = vadd.f32 %v114, %v296
  %v298 = vpop.f32.mrf.mxu0
  %v299 = vadd.f32 %v114, %v298
  %300 = vmatmul.bf16.gmra.mxu0 %v163
  %v301 = vpop.f32.mrf.mxu0
  %v302 = vadd.f32 %v114, %v301
  %v303 = vpop.f32.mrf.mxu0
  %v304 = vadd.f32 %v114, %v303
  %305 = vmatmul.bf16.gmra.mxu0 %v166
  %v306 = vpop.f32.mrf.mxu0
  %v307 = vadd.f32 %v114, %v306
  %v308 = vpop.f32.mrf.mxu0
  %v309 = vadd.f32 %v114, %v308
  %310 = vmatmul.bf16.gmra.mxu0 %v169
  %v311 = vpop.f32.mrf.mxu0
  %v312 = vadd.f32 %v114, %v311
  %v313 = vpop.f32.mrf.mxu0
  %v314 = vadd.f32 %v114, %v313
  %315 = vmatmul.bf16.gmra.mxu0 %v172
  %v316 = vpop.f32.mrf.mxu0
  %v317 = vadd.f32 %v114, %v316
  %v318 = vpop.f32.mrf.mxu0
  %v319 = vadd.f32 %v114, %v318
  %320 = vmatmul.bf16.gmra.mxu0 %v175
  %v321 = vpop.f32.mrf.mxu0
  %v322 = vadd.f32 %v114, %v321
  %v323 = vpop.f32.mrf.mxu0
  %v324 = vadd.f32 %v114, %v323
  %325 = vmatmul.bf16.gmra.mxu0 %v178
  %v326 = vpop.f32.mrf.mxu0
  %v327 = vadd.f32 %v114, %v326
  %v328 = vpop.f32.mrf.mxu0
  %v329 = vadd.f32 %v114, %v328
  %330 = vmatmul.bf16.gmra.mxu0 %v181
  %v331 = vpop.f32.mrf.mxu0
  %v332 = vadd.f32 %v114, %v331
  %v333 = vpop.f32.mrf.mxu0
  %v334 = vadd.f32 %v114, %v333
  %335 = vmatmul.bf16.gmra.mxu0 %v184
  %v336 = vpop.f32.mrf.mxu0
  %v337 = vadd.f32 %v114, %v336
  %v338 = vpop.f32.mrf.mxu0
  %v339 = vadd.f32 %v114, %v338
  %340 = vmatmul.bf16.gmra.mxu0 %v187
  %v341 = vpop.f32.mrf.mxu0
  %v342 = vadd.f32 %v114, %v341
  %v343 = vpop.f32.mrf.mxu0
  %v344 = vadd.f32 %v114, %v343
  %345 = vmatmul.bf16.gmra.mxu0 %v190
  %v346 = vpop.f32.mrf.mxu0
  %v347 = vadd.f32 %v114, %v346
  %v348 = vpop.f32.mrf.mxu0
  %v349 = vadd.f32 %v114, %v348
  %350 = vmatmul.bf16.gmra.mxu0 %v193
  %v351 = vpop.f32.mrf.mxu0
  %v352 = vadd.f32 %v114, %v351
  %v353 = vpop.f32.mrf.mxu0
  %v354 = vadd.f32 %v114, %v353
  %355 = vmatmul.bf16.gmra.mxu0 %v196
  %v356 = vpop.f32.mrf.mxu0
  %v357 = vadd.f32 %v114, %v356
  %v358 = vpop.f32.mrf.mxu0
  %v359 = vadd.f32 %v114, %v358
  %360 = vmatmul.bf16.gmra.mxu0 %v199
  %v361 = vpop.f32.mrf.mxu0
  %v362 = vadd.f32 %v114, %v361
  %v363 = vpop.f32.mrf.mxu0
  %v364 = vadd.f32 %v114, %v363
  %365 = vmatmul.bf16.gmra.mxu0 %v202
  %v366 = vpop.f32.mrf.mxu0
  %v367 = vadd.f32 %v114, %v366
  %v368 = vpop.f32.mrf.mxu0
  %v369 = vadd.f32 %v114, %v368
  %370 = vmatmul.bf16.gmra.mxu0 %v205
  %v371 = vpop.f32.mrf.mxu0
  %v372 = vadd.f32 %v114, %v371
  %v373 = vpop.f32.mrf.mxu0
  %v374 = vadd.f32 %v114, %v373
  %375 = vmatmul.bf16.gmra.mxu0 %v208
  %v376 = vpop.f32.mrf.mxu0
  %v377 = vadd.f32 %v114, %v376
  %v378 = vpop.f32.mrf.mxu0
  %v379 = vadd.f32 %v114, %v378
  %380 = vmatmul.bf16.gmra.mxu0 %v211
  %v381 = vpop.f32.mrf.mxu0
  %v382 = vadd.f32 %v114, %v381
  %v383 = vpop.f32.mrf.mxu0
  %v384 = vadd.f32 %v114, %v383
  %385 = vdwg.mxu0
  %vm386 = vcmask 261120
  %387 = vst.msk [vmem:[%s3] sm:$0xff] %vm386, %v227
  %388 = vst.msk [vmem:[%s3 + $0x8] sm:$0xff] %vm386, %v229
  %389 = vst.msk [vmem:[%s3 + $0x10] sm:$0xff] %vm386, %v232
  %390 = vst.msk [vmem:[%s3 + $0x18] sm:$0xff] %vm386, %v234
  %391 = vst.msk [vmem:[%s3 + $0x20] sm:$0xff] %vm386, %v237
  %392 = vst.msk [vmem:[%s3 + $0x28] sm:$0xff] %vm386, %v239
  %393 = vst.msk [vmem:[%s3 + $0x30] sm:$0xff] %vm386, %v242
  %394 = vst.msk [vmem:[%s3 + $0x38] sm:$0xff] %vm386, %v244
  %395 = vst.msk [vmem:[%s3 + $0x40] sm:$0xff] %vm386, %v247
  %396 = vst.msk [vmem:[%s3 + $0x48] sm:$0xff] %vm386, %v249
  %397 = vst.msk [vmem:[%s3 + $0x50] sm:$0xff] %vm386, %v252
  %398 = vst.msk [vmem:[%s3 + $0x58] sm:$0xff] %vm386, %v254
  %399 = vst.msk [vmem:[%s3 + $0x60] sm:$0xff] %vm386, %v257
  %400 = vst.msk [vmem:[%s3 + $0x68] sm:$0xff] %vm386, %v259
  %401 = vst.msk [vmem:[%s3 + $0x70] sm:$0xff] %vm386, %v262
  %402 = vst.msk [vmem:[%s3 + $0x78] sm:$0xff] %vm386, %v264
  %403 = vst.msk [vmem:[%s3 + $0x80] sm:$0xff] %vm386, %v267
  %404 = vst.msk [vmem:[%s3 + $0x88] sm:$0xff] %vm386, %v269
  %405 = vst.msk [vmem:[%s3 + $0x90] sm:$0xff] %vm386, %v272
  %406 = vst.msk [vmem:[%s3 + $0x98] sm:$0xff] %vm386, %v274
  %407 = vst.msk [vmem:[%s3 + $0xa0] sm:$0xff] %vm386, %v277
  %408 = vst.msk [vmem:[%s3 + $0xa8] sm:$0xff] %vm386, %v279
  %409 = vst.msk [vmem:[%s3 + $0xb0] sm:$0xff] %vm386, %v282
  %410 = vst.msk [vmem:[%s3 + $0xb8] sm:$0xff] %vm386, %v284
  %411 = vst.msk [vmem:[%s3 + $0xc0] sm:$0xff] %vm386, %v287
  %412 = vst.msk [vmem:[%s3 + $0xc8] sm:$0xff] %vm386, %v289
  %413 = vst.msk [vmem:[%s3 + $0xd0] sm:$0xff] %vm386, %v292
  %414 = vst.msk [vmem:[%s3 + $0xd8] sm:$0xff] %vm386, %v294
  %415 = vst.msk [vmem:[%s3 + $0xe0] sm:$0xff] %vm386, %v297
  %416 = vst.msk [vmem:[%s3 + $0xe8] sm:$0xff] %vm386, %v299
  %417 = vst.msk [vmem:[%s3 + $0xf0] sm:$0xff] %vm386, %v302
  %418 = vst.msk [vmem:[%s3 + $0xf8] sm:$0xff] %vm386, %v304
  %419 = vst.msk [vmem:[%s3 + $0x100] sm:$0xff] %vm386, %v307
  %420 = vst.msk [vmem:[%s3 + $0x108] sm:$0xff] %vm386, %v309
  %421 = vst.msk [vmem:[%s3 + $0x110] sm:$0xff] %vm386, %v312
  %422 = vst.msk [vmem:[%s3 + $0x118] sm:$0xff] %vm386, %v314
  %423 = vst.msk [vmem:[%s3 + $0x120] sm:$0xff] %vm386, %v317
  %424 = vst.msk [vmem:[%s3 + $0x128] sm:$0xff] %vm386, %v319
  %425 = vst.msk [vmem:[%s3 + $0x130] sm:$0xff] %vm386, %v322
  %426 = vst.msk [vmem:[%s3 + $0x138] sm:$0xff] %vm386, %v324
  %427 = vst.msk [vmem:[%s3 + $0x140] sm:$0xff] %vm386, %v327
  %428 = vst.msk [vmem:[%s3 + $0x148] sm:$0xff] %vm386, %v329
  %429 = vst.msk [vmem:[%s3 + $0x150] sm:$0xff] %vm386, %v332
  %430 = vst.msk [vmem:[%s3 + $0x158] sm:$0xff] %vm386, %v334
  %431 = vst.msk [vmem:[%s3 + $0x160] sm:$0xff] %vm386, %v337
  %432 = vst.msk [vmem:[%s3 + $0x168] sm:$0xff] %vm386, %v339
  %433 = vst.msk [vmem:[%s3 + $0x170] sm:$0xff] %vm386, %v342
  %434 = vst.msk [vmem:[%s3 + $0x178] sm:$0xff] %vm386, %v344
  %435 = vst.msk [vmem:[%s3 + $0x180] sm:$0xff] %vm386, %v347
  %436 = vst.msk [vmem:[%s3 + $0x188] sm:$0xff] %vm386, %v349
  %437 = vst.msk [vmem:[%s3 + $0x190] sm:$0xff] %vm386, %v352
  %438 = vst.msk [vmem:[%s3 + $0x198] sm:$0xff] %vm386, %v354
  %439 = vst.msk [vmem:[%s3 + $0x1a0] sm:$0xff] %vm386, %v357
  %440 = vst.msk [vmem:[%s3 + $0x1a8] sm:$0xff] %vm386, %v359
  %441 = vst.msk [vmem:[%s3 + $0x1b0] sm:$0xff] %vm386, %v362
  %442 = vst.msk [vmem:[%s3 + $0x1b8] sm:$0xff] %vm386, %v364
  %443 = vst.msk [vmem:[%s3 + $0x1c0] sm:$0xff] %vm386, %v367
  %444 = vst.msk [vmem:[%s3 + $0x1c8] sm:$0xff] %vm386, %v369
  %445 = vst.msk [vmem:[%s3 + $0x1d0] sm:$0xff] %vm386, %v372
  %446 = vst.msk [vmem:[%s3 + $0x1d8] sm:$0xff] %vm386, %v374
  %447 = vst.msk [vmem:[%s3 + $0x1e0] sm:$0xff] %vm386, %v377
  %448 = vst.msk [vmem:[%s3 + $0x1e8] sm:$0xff] %vm386, %v379
  %449 = vst.msk [vmem:[%s3 + $0x1f0] sm:$0xff] %vm386, %v382
  %450 = vst.msk [vmem:[%s3 + $0x1f8] sm:$0xff] %vm386, %v384
  // Predicated region
  $region14: #{tpu_custom_call.1} parent=0 // pred_check
    _
  $region15: #{tpu_custom_call.1} parent=0 // pred_check_branch
    %452 = sbr.rel (0) target = $region17
  $region16: #{tpu_custom_call.1} parent=0 // pred_region
    _
  $region17: #{tpu_custom_call.1} parent=0 // pred_fallthru
    _
  // Predicated region
  $region18: #{tpu_custom_call.1} parent=0 // pred_check
    _
  $region19: #{tpu_custom_call.1} parent=0 // pred_check_branch
    %454 = sbr.rel (0) target = $region21
  $region20: #{tpu_custom_call.1} parent=0 // pred_region
    _
  $region21: #{tpu_custom_call.1} parent=0 // pred_fallthru
    _

</llo_original>
